<compile_context>
chip_gen: v6e
topology: v6e:2x2x1
jax: 0.10.0
libtpu: 0.0.40
codegen_flags: <defaults>
</compile_context>

<pallas_src>
import functools

import jax
import jax.numpy as jnp
from jax.experimental import pallas as pl
from jax.experimental.pallas import tpu as pltpu


def _ce_dice_kernel(x_ref, t_ref, out_ref, acc_ref, *, total_pixels):
    # x_ref / t_ref: (C, T, 128) blocks. Channel axis is the leading, untiled dim.
    n = pl.program_id(0)
    i = pl.program_id(1)
    C = x_ref.shape[0]

    is_first = (n == 0) & (i == 0)
    is_last = (n == pl.num_programs(0) - 1) & (i == pl.num_programs(1) - 1)

    # Zero the lane-wise accumulators on the very first grid step.
    @pl.when(is_first)
    def _():
        acc_ref[...] = jnp.zeros_like(acc_ref)

    x = x_ref[...].astype(jnp.float32)   # (C, T, 128) logits
    t = t_ref[...].astype(jnp.float32)   # (C, T, 128) one-hot-ish targets

    # log_softmax over the channel axis (dim=1 in NCHW == axis 0 here).
    m = jnp.max(x, axis=0, keepdims=True)
    lse = m + jnp.log(jnp.sum(jnp.exp(x - m), axis=0, keepdims=True))
    logp = x - lse

    # targets.argmax(dim=1) with first-occurrence tie-break, then gather logp.
    cidx = jax.lax.broadcasted_iota(jnp.int32, t.shape, 0)
    tmax = jnp.max(t, axis=0, keepdims=True)
    arg = jnp.min(jnp.where(t == tmax, cidx, C), axis=0, keepdims=True)
    onehot = (cidx == arg).astype(jnp.float32)

    # Per-pixel (lane-wise) partials; only channel-axis reductions here (pure VPU).
    ce_part = -jnp.sum(onehot * logp, axis=0)          # (T, 128)
    pr = logp[1:]                                      # drop channel 0
    gt = t[1:]
    tp_part = jnp.sum(gt * pr, axis=0)                 # (T, 128)
    spr_part = jnp.sum(pr, axis=0)                     # (T, 128)
    sgt_part = jnp.sum(gt, axis=0)                     # (T, 128)

    acc_ref[0] += ce_part   # sum of per-pixel NLL
    acc_ref[1] += tp_part   # tp = sum(gt * pr)  (channels 1..C-1)
    acc_ref[2] += spr_part  # sum(pr)            (channels 1..C-1)
    acc_ref[3] += sgt_part  # sum(gt)            (channels 1..C-1)

    # Single cross-lane reduction + scalar math on the last grid step.
    @pl.when(is_last)
    def _():
        eps = 1.0
        ce = jnp.sum(acc_ref[0]) / float(total_pixels)
        tp = jnp.sum(acc_ref[1])
        fp = jnp.sum(acc_ref[2]) - tp
        fn = jnp.sum(acc_ref[3]) - tp
        score = (2.0 * tp + eps) / (2.0 * tp + fn + fp + eps)
        dice = 1.0 - score
        out_ref[0, 0] = dice * 0.1 + ce


def _pick_tile_rows(rows, max_rows=64):
    """Largest divisor of `rows` that is <= max_rows and keeps the block legal
    (a multiple of 8 sublanes, or the full extent)."""
    for t in range(min(rows, max_rows), 0, -1):
        if rows % t == 0 and (t % 8 == 0 or t == rows):
            return t
    return rows


def ce_dice_loss(inputs_nchw, targets_nchw, *, max_tile_rows=64):
    N, C, H, W = inputs_nchw.shape
    HW = H * W
    assert HW % 128 == 0, "H*W must be a multiple of 128"
    R = HW // 128
    T = _pick_tile_rows(R, max_tile_rows)   # pixels per block = T * 128
    total_pixels = N * HW

    # Free reshapes (contiguous NCHW): no HBM transpose, batch becomes a grid axis.
    x = inputs_nchw.reshape(N, C, R, 128)
    t = targets_nchw.reshape(N, C, R, 128)

    kernel = functools.partial(_ce_dice_kernel, total_pixels=total_pixels)
    out = pl.pallas_call(
        kernel,
        out_shape=jax.ShapeDtypeStruct((1, 1), jnp.float32),
        grid_spec=pltpu.PrefetchScalarGridSpec(
            num_scalar_prefetch=0,
            grid=(N, R // T),
            in_specs=[
                pl.BlockSpec((None, C, T, 128), lambda n, i: (n, 0, i, 0)),
                pl.BlockSpec((None, C, T, 128), lambda n, i: (n, 0, i, 0)),
            ],
            out_specs=pl.BlockSpec(memory_space=pltpu.MemorySpace.SMEM),
            scratch_shapes=[pltpu.VMEM((4, T, 128), jnp.float32)],
        ),
        # Both axes carry the running accumulator -> sequential reduction.
        # TODO(synk): v7x 2-TC split would need per-core partial outputs + a JAX combine.
        compiler_params=pltpu.CompilerParams(
            dimension_semantics=("arbitrary", "arbitrary")),
    )(x, t)
    return out[0, 0]


def ce_dice_loss_ref(inputs, targets):
    """Pure-JAX reference mirroring the PyTorch module exactly."""
    logp = jax.nn.log_softmax(inputs, axis=1)
    idx = jnp.argmax(targets, axis=1)
    ce = -jnp.mean(jnp.take_along_axis(logp, idx[:, None, :, :], axis=1))
    pr = logp[:, 1:]
    gt = targets[:, 1:]
    tp = jnp.sum(gt * pr)
    fp = jnp.sum(pr) - tp
    fn = jnp.sum(gt) - tp
    eps = 1.0
    score = (2.0 * tp + eps) / (2.0 * tp + fn + fp + eps)
    return (1.0 - score) * 0.1 + ce


if __name__ == "__main__":
    # NLLLoss(weight=None) -> no learnable parameters/weights to initialize.
    key = jax.random.PRNGKey(0)
    k1, k2 = jax.random.split(key)

    N, C, H, W = 2, 4, 16, 16
    inputs = jax.random.normal(k1, (N, C, H, W), dtype=jnp.float32)
    cls = jax.random.randint(k2, (N, H, W), 0, C)
    targets = jax.nn.one_hot(cls, C, axis=1, dtype=jnp.float32)  # NCHW one-hot

    out = jax.block_until_ready(ce_dice_loss(inputs, targets))
    ref = ce_dice_loss_ref(inputs, targets)
    assert jnp.allclose(out, ref, atol=1e-5, rtol=1e-5), (out, ref)
    print("KERNEL_OK")
</pallas_src>

<mosaic_0001>
module attributes {stable_mosaic.version = 11 : i64} {
  func.func @_ce_dice_kernel(%arg0: i32, %arg1: i32, %arg2: memref<1x4x2x128xf32, #tpu.memory_space<vmem>>, %arg3: memref<1x4x2x128xf32, #tpu.memory_space<vmem>>, %arg4: memref<1x1xf32, #tpu.memory_space<smem>>, %arg5: memref<4x2x128xf32, #tpu.memory_space<vmem>>) attributes {dimension_semantics = [#tpu.dimension_semantics<arbitrary>, #tpu.dimension_semantics<arbitrary>], iteration_bounds = array<i64: 2, 1>, scalar_prefetch = 0 : i64, scratch_operands = 1 : i64, tpu.core_type = #tpu.core_type<tc>, window_params = [{transform_indices = @transform_0, window_bounds = array<i64: 1, 4, 2, 128>}, {transform_indices = @transform_1, window_bounds = array<i64: 1, 4, 2, 128>}, {transform_indices = @transform_2, window_bounds = array<i64: 1, 1>}]} {
    %c0_i32 = arith.constant 0 : i32
    %0 = arith.cmpi eq, %arg0, %c0_i32 : i32
    %c0_i32_0 = arith.constant 0 : i32
    %1 = arith.cmpi eq, %arg1, %c0_i32_0 : i32
    %2 = arith.andi %0, %1 : i1
    %c1_i32 = arith.constant 1 : i32
    %3 = arith.cmpi eq, %arg0, %c1_i32 : i32
    %c0_i32_1 = arith.constant 0 : i32
    %4 = arith.cmpi eq, %arg1, %c0_i32_1 : i32
    %5 = arith.andi %3, %4 : i1
    %6 = arith.extui %2 : i1 to i32
    %c0_i32_2 = arith.constant 0 : i32
    %7 = arith.cmpi ne, %6, %c0_i32_2 : i32
    scf.if %7 {
      %cst_40 = arith.constant 0.000000e+00 : f32
      %72 = vector.broadcast %cst_40 : f32 to vector<4x2x128xf32>
      %c0_41 = arith.constant 0 : index
      %c0_42 = arith.constant 0 : index
      %c0_43 = arith.constant 0 : index
      %73 = vector.load %arg5[%c0_41, %c0_42, %c0_43] : memref<4x2x128xf32, #tpu.memory_space<vmem>>, vector<4x2x128xf32>
      tpu.vector_store %arg5[%c0_41, %c0_42, %c0_43], %72 {strides = array<i32>} : memref<4x2x128xf32, #tpu.memory_space<vmem>>, vector<4x2x128xf32>,
    } else {
    }
    %c0 = arith.constant 0 : index
    %c0_3 = arith.constant 0 : index
    %c0_4 = arith.constant 0 : index
    %c0_5 = arith.constant 0 : index
    %8 = vector.load %arg2[%c0, %c0_3, %c0_4, %c0_5] : memref<1x4x2x128xf32, #tpu.memory_space<vmem>>, vector<1x4x2x128xf32>
    %9 = vector.shape_cast %8 : vector<1x4x2x128xf32> to vector<4x2x128xf32>
    %c0_6 = arith.constant 0 : index
    %c0_7 = arith.constant 0 : index
    %c0_8 = arith.constant 0 : index
    %c0_9 = arith.constant 0 : index
    %10 = vector.load %arg3[%c0_6, %c0_7, %c0_8, %c0_9] : memref<1x4x2x128xf32, #tpu.memory_space<vmem>>, vector<1x4x2x128xf32>
    %11 = vector.shape_cast %10 : vector<1x4x2x128xf32> to vector<4x2x128xf32>
    %cst = arith.constant dense<0xFF800000> : vector<2x128xf32>
    %12 = vector.multi_reduction <maximumf>, %9, %cst [0] : vector<4x2x128xf32> to vector<2x128xf32>
    %13 = vector.shape_cast %12 : vector<2x128xf32> to vector<1x2x128xf32>
    %14 = vector.broadcast %13 : vector<1x2x128xf32> to vector<4x2x128xf32>
    %15 = arith.subf %9, %14 : vector<4x2x128xf32>
    %16 = math.exp %15 : vector<4x2x128xf32>
    %cst_10 = arith.constant dense<0.000000e+00> : vector<2x128xf32>
    %17 = vector.multi_reduction <add>, %16, %cst_10 [0] : vector<4x2x128xf32> to vector<2x128xf32>
    %18 = vector.shape_cast %17 : vector<2x128xf32> to vector<1x2x128xf32>
    %19 = math.log %18 : vector<1x2x128xf32>
    %20 = arith.addf %13, %19 : vector<1x2x128xf32>
    %21 = vector.broadcast %20 : vector<1x2x128xf32> to vector<4x2x128xf32>
    %22 = arith.subf %9, %21 : vector<4x2x128xf32>
    %23 = tpu.iota {dimensions = array<i32: 0>} : vector<4x2x128xi32>
    %cst_11 = arith.constant dense<0xFF800000> : vector<2x128xf32>
    %24 = vector.multi_reduction <maximumf>, %11, %cst_11 [0] : vector<4x2x128xf32> to vector<2x128xf32>
    %25 = vector.shape_cast %24 : vector<2x128xf32> to vector<1x2x128xf32>
    %26 = vector.broadcast %25 : vector<1x2x128xf32> to vector<4x2x128xf32>
    %27 = arith.cmpf oeq, %11, %26 : vector<4x2x128xf32>
    %c4_i32 = arith.constant 4 : i32
    %28 = vector.broadcast %c4_i32 : i32 to vector<4x2x128xi32>
    %29 = arith.select %27, %23, %28 : vector<4x2x128xi1>, vector<4x2x128xi32>
    %cst_12 = arith.constant dense<2147483647> : vector<2x128xi32>
    %30 = vector.multi_reduction <minsi>, %29, %cst_12 [0] : vector<4x2x128xi32> to vector<2x128xi32>
    %31 = vector.shape_cast %30 : vector<2x128xi32> to vector<1x2x128xi32>
    %32 = vector.broadcast %31 : vector<1x2x128xi32> to vector<4x2x128xi32>
    %33 = arith.cmpi eq, %23, %32 : vector<4x2x128xi32>
    %34 = arith.extui %33 : vector<4x2x128xi1> to vector<4x2x128xi32>
    %35 = arith.sitofp %34 : vector<4x2x128xi32> to vector<4x2x128xf32>
    %36 = arith.mulf %35, %22 : vector<4x2x128xf32>
    %cst_13 = arith.constant dense<0.000000e+00> : vector<2x128xf32>
    %37 = vector.multi_reduction <add>, %36, %cst_13 [0] : vector<4x2x128xf32> to vector<2x128xf32>
    %cst_14 = arith.constant 0.000000e+00 : f32
    %38 = vector.broadcast %cst_14 : f32 to vector<2x128xf32>
    %39 = arith.subf %38, %37 : vector<2x128xf32>
    %40 = vector.extract_strided_slice %22 {offsets = [1, 0, 0], sizes = [3, 2, 128], strides = [1, 1, 1]} : vector<4x2x128xf32> to vector<3x2x128xf32>
    %41 = vector.extract_strided_slice %11 {offsets = [1, 0, 0], sizes = [3, 2, 128], strides = [1, 1, 1]} : vector<4x2x128xf32> to vector<3x2x128xf32>
    %42 = arith.mulf %41, %40 : vector<3x2x128xf32>
    %cst_15 = arith.constant dense<0.000000e+00> : vector<2x128xf32>
    %43 = vector.multi_reduction <add>, %42, %cst_15 [0] : vector<3x2x128xf32> to vector<2x128xf32>
    %cst_16 = arith.constant dense<0.000000e+00> : vector<2x128xf32>
    %44 = vector.multi_reduction <add>, %40, %cst_16 [0] : vector<3x2x128xf32> to vector<2x128xf32>
    %cst_17 = arith.constant dense<0.000000e+00> : vector<2x128xf32>
    %45 = vector.multi_reduction <add>, %41, %cst_17 [0] : vector<3x2x128xf32> to vector<2x128xf32>
    %c0_18 = arith.constant 0 : index
    %c0_19 = arith.constant 0 : index
    %c0_20 = arith.constant 0 : index
    %46 = vector.load %arg5[%c0_18, %c0_19, %c0_20] : memref<4x2x128xf32, #tpu.memory_space<vmem>>, vector<1x2x128xf32>
    %47 = vector.shape_cast %46 : vector<1x2x128xf32> to vector<2x128xf32>
    %48 = arith.addf %47, %39 : vector<2x128xf32>
    %c0_21 = arith.constant 0 : index
    %c0_22 = arith.constant 0 : index
    %c0_23 = arith.constant 0 : index
    %49 = vector.load %arg5[%c0_21, %c0_22, %c0_23] : memref<4x2x128xf32, #tpu.memory_space<vmem>>, vector<1x2x128xf32>
    %50 = vector.shape_cast %49 : vector<1x2x128xf32> to vector<2x128xf32>
    %51 = vector.shape_cast %48 : vector<2x128xf32> to vector<1x2x128xf32>
    tpu.vector_store %arg5[%c0_21, %c0_22, %c0_23], %51 {strides = array<i32>} : memref<4x2x128xf32, #tpu.memory_space<vmem>>, vector<1x2x128xf32>,
    %c1 = arith.constant 1 : index
    %c0_24 = arith.constant 0 : index
    %c0_25 = arith.constant 0 : index
    %52 = vector.load %arg5[%c1, %c0_24, %c0_25] : memref<4x2x128xf32, #tpu.memory_space<vmem>>, vector<1x2x128xf32>
    %53 = vector.shape_cast %52 : vector<1x2x128xf32> to vector<2x128xf32>
    %54 = arith.addf %53, %43 : vector<2x128xf32>
    %c1_26 = arith.constant 1 : index
    %c0_27 = arith.constant 0 : index
    %c0_28 = arith.constant 0 : index
    %55 = vector.load %arg5[%c1_26, %c0_27, %c0_28] : memref<4x2x128xf32, #tpu.memory_space<vmem>>, vector<1x2x128xf32>
    %56 = vector.shape_cast %55 : vector<1x2x128xf32> to vector<2x128xf32>
    %57 = vector.shape_cast %54 : vector<2x128xf32> to vector<1x2x128xf32>
    tpu.vector_store %arg5[%c1_26, %c0_27, %c0_28], %57 {strides = array<i32>} : memref<4x2x128xf32, #tpu.memory_space<vmem>>, vector<1x2x128xf32>,
    %c2 = arith.constant 2 : index
    %c0_29 = arith.constant 0 : index
    %c0_30 = arith.constant 0 : index
    %58 = vector.load %arg5[%c2, %c0_29, %c0_30] : memref<4x2x128xf32, #tpu.memory_space<vmem>>, vector<1x2x128xf32>
    %59 = vector.shape_cast %58 : vector<1x2x128xf32> to vector<2x128xf32>
    %60 = arith.addf %59, %44 : vector<2x128xf32>
    %c2_31 = arith.constant 2 : index
    %c0_32 = arith.constant 0 : index
    %c0_33 = arith.constant 0 : index
    %61 = vector.load %arg5[%c2_31, %c0_32, %c0_33] : memref<4x2x128xf32, #tpu.memory_space<vmem>>, vector<1x2x128xf32>
    %62 = vector.shape_cast %61 : vector<1x2x128xf32> to vector<2x128xf32>
    %63 = vector.shape_cast %60 : vector<2x128xf32> to vector<1x2x128xf32>
    tpu.vector_store %arg5[%c2_31, %c0_32, %c0_33], %63 {strides = array<i32>} : memref<4x2x128xf32, #tpu.memory_space<vmem>>, vector<1x2x128xf32>,
    %c3 = arith.constant 3 : index
    %c0_34 = arith.constant 0 : index
    %c0_35 = arith.constant 0 : index
    %64 = vector.load %arg5[%c3, %c0_34, %c0_35] : memref<4x2x128xf32, #tpu.memory_space<vmem>>, vector<1x2x128xf32>
    %65 = vector.shape_cast %64 : vector<1x2x128xf32> to vector<2x128xf32>
    %66 = arith.addf %65, %45 : vector<2x128xf32>
    %c3_36 = arith.constant 3 : index
    %c0_37 = arith.constant 0 : index
    %c0_38 = arith.constant 0 : index
    %67 = vector.load %arg5[%c3_36, %c0_37, %c0_38] : memref<4x2x128xf32, #tpu.memory_space<vmem>>, vector<1x2x128xf32>
    %68 = vector.shape_cast %67 : vector<1x2x128xf32> to vector<2x128xf32>
    %69 = vector.shape_cast %66 : vector<2x128xf32> to vector<1x2x128xf32>
    tpu.vector_store %arg5[%c3_36, %c0_37, %c0_38], %69 {strides = array<i32>} : memref<4x2x128xf32, #tpu.memory_space<vmem>>, vector<1x2x128xf32>,
    %70 = arith.extui %5 : i1 to i32
    %c0_i32_39 = arith.constant 0 : i32
    %71 = arith.cmpi ne, %70, %c0_i32_39 : i32
    scf.if %71 {
      %c0_40 = arith.constant 0 : index
      %c0_41 = arith.constant 0 : index
      %c0_42 = arith.constant 0 : index
      %72 = vector.load %arg5[%c0_40, %c0_41, %c0_42] : memref<4x2x128xf32, #tpu.memory_space<vmem>>, vector<1x2x128xf32>
      %73 = vector.shape_cast %72 : vector<1x2x128xf32> to vector<2x128xf32>
      %74 = vector.shape_cast %73 : vector<2x128xf32> to vector<1x2x128xf32>
      %cst_43 = arith.constant dense<0.000000e+00> : vector<1xf32>
      %75 = vector.multi_reduction <add>, %74, %cst_43 [1, 2] : vector<1x2x128xf32> to vector<1xf32>
      %76 = vector.shape_cast %75 : vector<1xf32> to vector<1x1x1xf32>
      %77 = vector.extract %76[0, 0, 0] : f32 from vector<1x1x1xf32>
      %cst_44 = arith.constant 5.120000e+02 : f32
      %78 = arith.divf %77, %cst_44 : f32
      %c1_45 = arith.constant 1 : index
      %c0_46 = arith.constant 0 : index
      %c0_47 = arith.constant 0 : index
      %79 = vector.load %arg5[%c1_45, %c0_46, %c0_47] : memref<4x2x128xf32, #tpu.memory_space<vmem>>, vector<1x2x128xf32>
      %80 = vector.shape_cast %79 : vector<1x2x128xf32> to vector<2x128xf32>
      %81 = vector.shape_cast %80 : vector<2x128xf32> to vector<1x2x128xf32>
      %cst_48 = arith.constant dense<0.000000e+00> : vector<1xf32>
      %82 = vector.multi_reduction <add>, %81, %cst_48 [1, 2] : vector<1x2x128xf32> to vector<1xf32>
      %83 = vector.shape_cast %82 : vector<1xf32> to vector<1x1x1xf32>
      %84 = vector.extract %83[0, 0, 0] : f32 from vector<1x1x1xf32>
      %c2_49 = arith.constant 2 : index
      %c0_50 = arith.constant 0 : index
      %c0_51 = arith.constant 0 : index
      %85 = vector.load %arg5[%c2_49, %c0_50, %c0_51] : memref<4x2x128xf32, #tpu.memory_space<vmem>>, vector<1x2x128xf32>
      %86 = vector.shape_cast %85 : vector<1x2x128xf32> to vector<2x128xf32>
      %87 = vector.shape_cast %86 : vector<2x128xf32> to vector<1x2x128xf32>
      %cst_52 = arith.constant dense<0.000000e+00> : vector<1xf32>
      %88 = vector.multi_reduction <add>, %87, %cst_52 [1, 2] : vector<1x2x128xf32> to vector<1xf32>
      %89 = vector.shape_cast %88 : vector<1xf32> to vector<1x1x1xf32>
      %90 = vector.extract %89[0, 0, 0] : f32 from vector<1x1x1xf32>
      %91 = arith.subf %90, %84 : f32
      %c3_53 = arith.constant 3 : index
      %c0_54 = arith.constant 0 : index
      %c0_55 = arith.constant 0 : index
      %92 = vector.load %arg5[%c3_53, %c0_54, %c0_55] : memref<4x2x128xf32, #tpu.memory_space<vmem>>, vector<1x2x128xf32>
      %93 = vector.shape_cast %92 : vector<1x2x128xf32> to vector<2x128xf32>
      %94 = vector.shape_cast %93 : vector<2x128xf32> to vector<1x2x128xf32>
      %cst_56 = arith.constant dense<0.000000e+00> : vector<1xf32>
      %95 = vector.multi_reduction <add>, %94, %cst_56 [1, 2] : vector<1x2x128xf32> to vector<1xf32>
      %96 = vector.shape_cast %95 : vector<1xf32> to vector<1x1x1xf32>
      %97 = vector.extract %96[0, 0, 0] : f32 from vector<1x1x1xf32>
      %98 = arith.subf %97, %84 : f32
      %cst_57 = arith.constant 2.000000e+00 : f32
      %99 = arith.mulf %cst_57, %84 : f32
      %cst_58 = arith.constant 1.000000e+00 : f32
      %100 = arith.addf %99, %cst_58 : f32
      %cst_59 = arith.constant 2.000000e+00 : f32
      %101 = arith.mulf %cst_59, %84 : f32
      %102 = arith.addf %101, %98 : f32
      %103 = arith.addf %102, %91 : f32
      %cst_60 = arith.constant 1.000000e+00 : f32
      %104 = arith.addf %103, %cst_60 : f32
      %105 = arith.divf %100, %104 : f32
      %cst_61 = arith.constant 1.000000e+00 : f32
      %106 = arith.subf %cst_61, %105 : f32
      %cst_62 = arith.constant 1.000000e-01 : f32
      %107 = arith.mulf %106, %cst_62 : f32
      %108 = arith.addf %107, %78 : f32
      %c0_63 = arith.constant 0 : index
      %c0_64 = arith.constant 0 : index
      %109 = memref.load %arg4[%c0_63, %c0_64] : memref<1x1xf32, #tpu.memory_space<smem>>
      memref.store %108, %arg4[%c0_63, %c0_64] : memref<1x1xf32, #tpu.memory_space<smem>>
    } else {
    }
    return
  }
  func.func @transform_0(%arg0: i32, %arg1: i32) -> (i32, i32, i32, i32) {
    %c0_i32 = arith.constant 0 : i32
    %c0_i32_0 = arith.constant 0 : i32
    %c0_i32_1 = arith.constant 0 : i32
    return %arg0, %c0_i32, %arg1, %c0_i32_0 : i32, i32, i32, i32
  }
  func.func @transform_1(%arg0: i32, %arg1: i32) -> (i32, i32, i32, i32) {
    %c0_i32 = arith.constant 0 : i32
    %c0_i32_0 = arith.constant 0 : i32
    %c0_i32_1 = arith.constant 0 : i32
    return %arg0, %c0_i32, %arg1, %c0_i32_0 : i32, i32, i32, i32
  }
  func.func @transform_2(%arg0: i32, %arg1: i32) -> (i32, i32) {
    %c0_i32 = arith.constant 0 : i32
    %c0_i32_0 = arith.constant 0 : i32
    %c0_i32_1 = arith.constant 0 : i32
    return %c0_i32, %c0_i32_0 : i32, i32
  }
}

</mosaic_0001>

<llo_original>
// kernel: tpu_custom_call.1
$region0: #{tpu_custom_call.1}
  #allocation0 [shape = 'u32[]', space=smem, size = 0x4, offset = 0x4, fixed_abs, tag = 'smem constant byte address 0x4 - core index']
  #allocation1 [shape = 'u32[144,128]{1,0:T(1,128)}', space=vmem, size = 0x12000, scoped, tag = 'internal scratch']
  #allocation2 [shape = 'f32[4,2,128]{2,1,0:T(2,128)}', space=vmem, size = 0x1000, scoped, tag = 'scratch operand']
  %s0 = inlined_call_operand.hbm [shape: f32[2,4,2,128], index: 0, kind: input, shape index: {}]
  %s1 = inlined_call_operand.hbm [shape: f32[2,4,2,128], index: 1, kind: input, shape index: {}]
  %s2 = inlined_call_operand.hbm [shape: f32[1,1], index: 2, kind: output, shape index: {}]
  %s3 = sld [smem:[#allocation0]]
  $region57: #{tpu_custom_call.1} parent=0
    _
  %s5 = ssub.s32 1, %s3
  %s6 = scalar_select 0, %s5, %s3
  $region1: #{tpu_custom_call.1} parent=0
    #allocation3 [shape = 'u8[8192]{0}', space=vmem, size = 0x2000, scoped, tag = 'input window, operand 0']
    #allocation4 [shape = 's32[2]{0}', space=sflag, size = 0x8, scoped, tag = 'scoped memory for tpu_custom_call.1']
    #allocation5 [shape = 's32[2]{0}', space=sflag, size = 0x8, scoped, tag = 'scoped memory for tpu_custom_call.1']
    #allocation6 [shape = 'u8[8192]{0}', space=vmem, size = 0x2000, scoped, tag = 'input window, operand 1']
    #allocation7 [shape = 's32[2]{0}', space=sflag, size = 0x8, scoped, tag = 'scoped memory for tpu_custom_call.1']
    #allocation8 [shape = 'u8[512]{0}', space=smem, size = 0x200, scoped, tag = 'output window, operand 0, single buffered']
    %7 = vsyncpa [#allocation4], 0
    %s8 = scalar_lea.sflag [#allocation4], 1
    %9 = vsyncpa %s8, 0
    %10 = vsyncpa [#allocation7], 0
    %s11 = scalar_lea.sflag [#allocation7], 1
    %12 = vsyncpa %s11, 0
    %13 = vsyncpa [#allocation5], 0
    loop: start=0, step=1, limit=4
    $region2: #{tpu_custom_call.1} parent=1 // loop_pre_header
      _
    $region3: #{tpu_custom_call.1} parent=1 // loop_header
      %s15 = sphi 0, %s19
      %p16 = scmp.ge.s32.totalorder %s15, 4
      %s22 = sphi 0, %s34
      %s23 = sphi 0, %s30
      %s24 = sphi 0, %s22
      %s25 = sphi 0, %s23
      %s26 = sphi 0, %s24
      %s27 = sphi 0, %s25
      %s39 = sphi 0, %s41
      %s42 = sphi 0, %s39
      %s43 = sphi 0, %s42
      %s59 = sphi 0, %s43
      %s67 = sphi 0, %s69
      %s70 = sphi 0, %s67
      %s71 = sphi 0, %s70
      %s87 = sphi 0, %s71
      %s91 = sphi 0, %s91
      %s93 = sphi 0, %s91
      %s94 = sphi 0, %s93
      %s108 = sphi 0, %s94
    $region4: #{tpu_custom_call.1} parent=1 // loop_header_branch
      %18 = sbr.rel (%p16) target = $region8
    $region5: #{tpu_custom_call.1} parent=1 // loop_body
      %s20 = ssub.s32 %s15, 1
      %s21 = ssub.s32 %s15, 2
      %s28 = sadd.s32 1, %s23
      %p29 = scmp.ge.s32.totalorder %s28, 1
      %s30 = scalar_select %p29, 0, %s28
      %s31 = sadd.s32 1, %s22
      %s32 = scalar_select %p29, %s31, %s22
      %p33 = scmp.ge.s32.totalorder %s32, 2
      %s34 = scalar_select %p33, 0, %s32
      %s35 = ssub.s32 %s22, %s34
      %s36 = ssub.s32 %s23, %s30
      %s37 = sor.u32 %s35, %s36
      %p38 = scmp.eq.s32.totalorder %s37, 0
      %s40 = sadd.s32 %s39, 1
      %s41 = scalar_select %p38, %s39, %s40
      %p44 = pneg %p38
      %p45 = scmp.eq.s32.totalorder %s15, 1
      %p46 = por %p44, %p45
      %p47 = scmp.ne.s32.totalorder %s39, %s42
      %p48 = scmp.eq.s32.totalorder %s15, 0
      %p49 = por %p47, %p48
      %p50 = scmp.ne.s32.totalorder %s39, %s42
      %p51 = scmp.eq.s32.totalorder %s20, 1
      %p52 = por %p50, %p51
      %p53 = scmp.ne.s32.totalorder %s42, %s43
      %p54 = scmp.eq.s32.totalorder %s20, 0
      %p55 = por %p53, %p54
      %p56 = scmp.ne.s32.totalorder %s42, %s43
      %p57 = scmp.eq.s32.totalorder %s21, 1
      %p58 = por %p56, %p57
      %p60 = scmp.ne.s32.totalorder %s43, %s59
      %p61 = scmp.eq.s32.totalorder %s21, 0
      %p62 = por %p60, %p61
      %s63 = ssub.s32 %s22, %s34
      %s64 = ssub.s32 %s23, %s30
      %s65 = sor.u32 %s63, %s64
      %p66 = scmp.eq.s32.totalorder %s65, 0
      %s68 = sadd.s32 %s67, 1
      %s69 = scalar_select %p66, %s67, %s68
      %p72 = pneg %p66
      %p73 = scmp.eq.s32.totalorder %s15, 1
      %p74 = por %p72, %p73
      %p75 = scmp.ne.s32.totalorder %s67, %s70
      %p76 = scmp.eq.s32.totalorder %s15, 0
      %p77 = por %p75, %p76
      %p78 = scmp.ne.s32.totalorder %s67, %s70
      %p79 = scmp.eq.s32.totalorder %s20, 1
      %p80 = por %p78, %p79
      %p81 = scmp.ne.s32.totalorder %s70, %s71
      %p82 = scmp.eq.s32.totalorder %s20, 0
      %p83 = por %p81, %p82
      %p84 = scmp.ne.s32.totalorder %s70, %s71
      %p85 = scmp.eq.s32.totalorder %s21, 1
      %p86 = por %p84, %p85
      %p88 = scmp.ne.s32.totalorder %s71, %s87
      %p89 = scmp.eq.s32.totalorder %s21, 0
      %p90 = por %p88, %p89
      %s92 = sadd.s32 %s91, 1
      %p95 = scmp.eq.s32.totalorder %s15, 1
      %p96 = scmp.ne.s32.totalorder %s91, %s93
      %p97 = scmp.eq.s32.totalorder %s15, 0
      %p98 = por %p96, %p97
      %p99 = scmp.ne.s32.totalorder %s91, %s93
      %p100 = scmp.eq.s32.totalorder %s20, 1
      %p101 = por %p99, %p100
      %p102 = scmp.ne.s32.totalorder %s93, %s94
      %p103 = scmp.eq.s32.totalorder %s20, 0
      %p104 = por %p102, %p103
      %p105 = scmp.ne.s32.totalorder %s93, %s94
      %p106 = scmp.eq.s32.totalorder %s21, 1
      %p107 = por %p105, %p106
      %p109 = scmp.ne.s32.totalorder %s94, %s108
      %p110 = scmp.eq.s32.totalorder %s21, 0
      %p111 = por %p109, %p110
      %p112 = scmp.le.s32.totalorder 1, %s15
      %p113 = scmp.lt.s32.totalorder %s15, 3
      %p114 = pnand %p112, %p113
      %p115 = pneg %p114
      // Predicated region
      $region9: #{tpu_custom_call.1} parent=5 // pred_check
        _
      $region10: #{tpu_custom_call.1} parent=5 // pred_check_branch
        %117 = sbr.rel (%p114) target = $region12
      $region11: #{tpu_custom_call.1} parent=5 // pred_region
        %s118 = ssub.s32 %s15, 1
      $region12: #{tpu_custom_call.1} parent=5 // pred_fallthru
        _
      %p119 = scmp.lt.s32.totalorder %s15, 2
      // Predicated region
      $region13: #{tpu_custom_call.1} parent=5 // pred_check
        %p120 = pneg %p119
      $region14: #{tpu_custom_call.1} parent=5 // pred_check_branch
        %122 = sbr.rel (%p120) target = $region16
      $region15: #{tpu_custom_call.1} parent=5 // pred_region
        // Predicated region
        $region17: #{tpu_custom_call.1} parent=15 // pred_check
          %p123 = pneg %p49
        $region18: #{tpu_custom_call.1} parent=15 // pred_check_branch
          %125 = sbr.rel (%p123) target = $region20
        $region19: #{tpu_custom_call.1} parent=15 // pred_region
          %s126 = sand.u32 %s39, 1
          %s127 = scalar_lea.sflag [#allocation4], %s126
          %s128 = sand.u32 %s39, 1
          %s129 = smul.addr %s128, 8
          %s130 = scalar_lea.vmem [#allocation3], %s129
          %s132 = ssub.s32 128, 128
          %133 = vsyncadd %s127, %s132
          %s134 = smul.addr %s22, 4
          %s135 = sadd.s32 %s23, %s134
          %s136 = smul.addr %s135, 32
          %s137 = scalar_lea.hbm %s0, %s136
          %s138 = sshll.u32 %s130, 4
          %s139 = int_to_ptr.vmem [resolvable:$true] %s138
          %144 = dma.hbm_to_vmem [thread:$0]  %s137, 128, %s139, %s127, 32, 32, 2
        $region20: #{tpu_custom_call.1} parent=15 // pred_fallthru
          _
        // Predicated region
        $region21: #{tpu_custom_call.1} parent=15 // pred_check
          %p145 = pneg %p77
        $region22: #{tpu_custom_call.1} parent=15 // pred_check_branch
          %147 = sbr.rel (%p145) target = $region24
        $region23: #{tpu_custom_call.1} parent=15 // pred_region
          %s148 = sand.u32 %s67, 1
          %s149 = scalar_lea.sflag [#allocation7], %s148
          %s150 = sand.u32 %s67, 1
          %s151 = smul.addr %s150, 8
          %s152 = scalar_lea.vmem [#allocation6], %s151
          %s154 = ssub.s32 128, 128
          %155 = vsyncadd %s149, %s154
          %s156 = smul.addr %s22, 4
          %s157 = sadd.s32 %s23, %s156
          %s158 = smul.addr %s157, 32
          %s159 = scalar_lea.hbm %s1, %s158
          %s160 = sshll.u32 %s152, 4
          %s161 = int_to_ptr.vmem [resolvable:$true] %s160
          %166 = dma.hbm_to_vmem [thread:$0]  %s159, 128, %s161, %s149, 32, 32, 2
        $region24: #{tpu_custom_call.1} parent=15 // pred_fallthru
          _
      $region16: #{tpu_custom_call.1} parent=5 // pred_fallthru
        _
      %p167 = scmp.le.s32.totalorder 1, %s15
      %p168 = scmp.lt.s32.totalorder %s15, 3
      %p169 = pnand %p167, %p168
      %p170 = pneg %p169
      // Predicated region
      $region25: #{tpu_custom_call.1} parent=5 // pred_check
        _
      $region26: #{tpu_custom_call.1} parent=5 // pred_check_branch
        %172 = sbr.rel (%p169) target = $region28
      $region27: #{tpu_custom_call.1} parent=5 // pred_region
        %s173 = ssub.s32 %s15, 1
        %s174 = sand.u32 %s42, 1
        %s175 = scalar_lea.sflag [#allocation4], %s174
        %s176 = sand.u32 %s42, 1
        %s177 = smul.addr %s176, 8
        %s178 = scalar_lea.vmem [#allocation3], %s177
        // Predicated region
        $region29: #{tpu_custom_call.1} parent=27 // pred_check
          %p179 = pneg %p55
        $region30: #{tpu_custom_call.1} parent=27 // pred_check_branch
          %181 = sbr.rel (%p179) target = $region32
        $region31: #{tpu_custom_call.1} parent=27 // pred_region
          %182 = dma.done %s175, 128
        $region32: #{tpu_custom_call.1} parent=27 // pred_fallthru
          _
        %s183 = sand.u32 %s70, 1
        %s184 = scalar_lea.sflag [#allocation7], %s183
        %s185 = sand.u32 %s70, 1
        %s186 = smul.addr %s185, 8
        %s187 = scalar_lea.vmem [#allocation6], %s186
        // Predicated region
        $region33: #{tpu_custom_call.1} parent=27 // pred_check
          %p188 = pneg %p83
        $region34: #{tpu_custom_call.1} parent=27 // pred_check_branch
          %190 = sbr.rel (%p188) target = $region36
        $region35: #{tpu_custom_call.1} parent=27 // pred_region
          %191 = dma.done %s184, 128
        $region36: #{tpu_custom_call.1} parent=27 // pred_fallthru
          _
        %s192 = sand.u32 %s42, 1
        %s193 = scalar_lea.sflag [#allocation4], %s192
        %s194 = sand.u32 %s42, 1
        %s195 = smul.addr %s194, 8
        %s196 = scalar_lea.vmem [#allocation3], %s195
        %p197 = pneg %p55
        %p198 = pneg %p52
        %s199 = sand.u32 %s70, 1
        %s200 = scalar_lea.sflag [#allocation7], %s199
        %s201 = sand.u32 %s70, 1
        %s202 = smul.addr %s201, 8
        %s203 = scalar_lea.vmem [#allocation6], %s202
        %p204 = pneg %p83
        %p205 = pneg %p80
        %p206 = pneg %p104
        %p207 = pneg %p101
        %p208 = scmp.eq.s32.totalorder %s24, 0
        %p209 = scmp.eq.s32.totalorder %s25, 0
        %p210 = pnand %p208, %p209
        %p211 = pneg %p210
        %p212 = scmp.eq.s32.totalorder %s24, 1
        %p213 = pnand %p212, %p209
        %p214 = pneg %p213
        // Predicated region
        $region37: #{tpu_custom_call.1} parent=27 // pred_check
          _
        $region38: #{tpu_custom_call.1} parent=27 // pred_check_branch
          %216 = sbr.rel (%p210) target = $region40
        $region39: #{tpu_custom_call.1} parent=27 // pred_region
          %217 = vst [vmem:[#allocation2] sm:$0x3] 0.0
          %218 = vst [vmem:[#allocation2 + $0x2] sm:$0x3] 0.0
          %219 = vst [vmem:[#allocation2 + $0x4] sm:$0x3] 0.0
          %220 = vst [vmem:[#allocation2 + $0x6] sm:$0x3] 0.0
        $region40: #{tpu_custom_call.1} parent=27 // pred_fallthru
          _
        %v221 = vld [vmem:[%s178] sm:$0x3]
        %v222 = vld [vmem:[%s178 + $0x2] sm:$0x3]
        %v223 = vld [vmem:[%s178 + $0x4] sm:$0x3]
        %v224 = vld [vmem:[%s178 + $0x6] sm:$0x3]
        %v225 = vld [vmem:[%s187] sm:$0x3]
        %v226 = vld [vmem:[%s187 + $0x2] sm:$0x3]
        %v227 = vld [vmem:[%s187 + $0x4] sm:$0x3]
        %v228 = vld [vmem:[%s187 + $0x6] sm:$0x3]
        %vm229 = vcmask 1041408
        %v230 = vsel %vm229, %v221, -inf
        %v231 = vsel %vm229, %v222, -inf
        %v232 = vsel %vm229, %v223, -inf
        %v233 = vsel %vm229, %v224, -inf
        %v234 = vmax.f32 %v230, %v231
        %v235 = vmax.f32 %v232, %v233
        %v236 = vmax.f32 %v234, %v235
        %v237 = vsub.f32 %v221, %v236
        %v238 = vsub.f32 %v222, %v236
        %v239 = vsub.f32 %v223, %v236
        %v240 = vsub.f32 %v224, %v236
        %v241 = vmul.f32 %v237, 1.442695
        %v242 = vpow.pop %v241
        %v243 = vmul.f32 %v238, 1.442695
        %v244 = vpow.pop %v243
        %v245 = vmul.f32 %v239, 1.442695
        %v246 = vpow.pop %v245
        %v247 = vmul.f32 %v240, 1.442695
        %v248 = vpow.pop %v247
        %v249 = vsel %vm229, %v242, 0.0
        %v250 = vsel %vm229, %v244, 0.0
        %v251 = vadd.f32 %v249, %v250
        %v252 = vsel %vm229, %v246, 0.0
        %v253 = vadd.f32 %v251, %v252
        %v254 = vsel %vm229, %v248, 0.0
        %v255 = vadd.f32 %v253, %v254
        %v256 = vlog2.pop %v255
        %v257 = vmul.f32 %v256, 0.6931472
        %v258 = vadd.f32 %v236, %v257
        %v259 = vsub.f32 %v221, %v258
        %v260 = vsub.f32 %v222, %v258
        %v261 = vsub.f32 %v223, %v258
        %v262 = vsub.f32 %v224, %v258
        %v263 = vsel %vm229, %v225, -inf
        %v264 = vsel %vm229, %v226, -inf
        %v265 = vsel %vm229, %v227, -inf
        %v266 = vsel %vm229, %v228, -inf
        %v267 = vmax.f32 %v263, %v264
        %v268 = vmax.f32 %v265, %v266
        %v269 = vmax.f32 %v267, %v268
        %vm270 = vcmp.eq.f32.partialorder %v225, %v269
        %vm271 = vcmp.eq.f32.partialorder %v226, %v269
        %vm272 = vcmp.eq.f32.partialorder %v227, %v269
        %vm273 = vcmp.eq.f32.partialorder %v228, %v269
        %v274 = vsel %vm270, 0, 4
        %v275 = vsel %vm271, 1, 4
        %v276 = vsel %vm272, 2, 4
        %v277 = vsel %vm273, 3, 4
        %v278 = vsel %vm229, %v274, 2147483647
        %v279 = vsel %vm229, %v275, 2147483647
        %v280 = vsel %vm229, %v276, 2147483647
        %v281 = vsel %vm229, %v277, 2147483647
        %vm282 = vcmp.lt.s32.totalorder %v278, %v279
        %v283 = vsel %vm282, %v278, %v279
        %vm284 = vcmp.lt.s32.totalorder %v280, %v281
        %v285 = vsel %vm284, %v280, %v281
        %vm286 = vcmp.lt.s32.totalorder %v283, %v285
        %v287 = vsel %vm286, %v283, %v285
        %vm288 = vcmp.eq.s32.totalorder %v287, 0
        %vm289 = vcmp.eq.s32.totalorder %v287, 1
        %vm290 = vcmp.eq.s32.totalorder %v287, 2
        %vm291 = vcmp.eq.s32.totalorder %v287, 3
        %v292 = vsel %vm288, 1, 0
        %v293 = vsel %vm289, 1, 0
        %v294 = vsel %vm290, 1, 0
        %v295 = vsel %vm291, 1, 0
        %v296 = vcvt.s32.f32 %v292
        %v297 = vcvt.s32.f32 %v293
        %v298 = vcvt.s32.f32 %v294
        %v299 = vcvt.s32.f32 %v295
        %v300 = vmul.f32 %v296, %v259
        %v301 = vmul.f32 %v297, %v260
        %v302 = vmul.f32 %v298, %v261
        %v303 = vmul.f32 %v299, %v262
        %v304 = vsel %vm229, %v300, 0.0
        %v305 = vsel %vm229, %v301, 0.0
        %v306 = vadd.f32 %v304, %v305
        %v307 = vsel %vm229, %v302, 0.0
        %v308 = vadd.f32 %v306, %v307
        %v309 = vsel %vm229, %v303, 0.0
        %v310 = vadd.f32 %v308, %v309
        %v311 = vsub.f32 0.0, %v310
        %v312 = vmul.f32 %v226, %v260
        %v313 = vmul.f32 %v227, %v261
        %v314 = vmul.f32 %v228, %v262
        %v315 = vsel %vm229, %v312, 0.0
        %v316 = vsel %vm229, %v313, 0.0
        %v317 = vadd.f32 %v315, %v316
        %v318 = vsel %vm229, %v314, 0.0
        %v319 = vadd.f32 %v317, %v318
        %v320 = vsel %vm229, %v260, 0.0
        %v321 = vsel %vm229, %v261, 0.0
        %v322 = vadd.f32 %v320, %v321
        %v323 = vsel %vm229, %v262, 0.0
        %v324 = vadd.f32 %v322, %v323
        %v325 = vsel %vm229, %v226, 0.0
        %v326 = vsel %vm229, %v227, 0.0
        %v327 = vadd.f32 %v325, %v326
        %v328 = vsel %vm229, %v228, 0.0
        %v329 = vadd.f32 %v327, %v328
        %v330 = vld [vmem:[#allocation2] sm:$0x3]
        %v331 = vadd.f32 %v330, %v311
        %332 = vst [vmem:[#allocation2] sm:$0x3] %v331
        %s333 = scalar_lea.vmem [#allocation2], 2
        %v334 = vld [vmem:[%s333] sm:$0x3]
        %v335 = vadd.f32 %v334, %v319
        %336 = vst [vmem:[%s333] sm:$0x3] %v335
        %s337 = scalar_lea.vmem [#allocation2], 4
        %v338 = vld [vmem:[%s337] sm:$0x3]
        %v339 = vadd.f32 %v338, %v324
        %340 = vst [vmem:[%s337] sm:$0x3] %v339
        %s341 = scalar_lea.vmem [#allocation2], 6
        %v342 = vld [vmem:[%s341] sm:$0x3]
        %v343 = vadd.f32 %v342, %v329
        %344 = vst [vmem:[%s341] sm:$0x3] %v343
        // Predicated region
        $region41: #{tpu_custom_call.1} parent=27 // pred_check
          _
        $region42: #{tpu_custom_call.1} parent=27 // pred_check_branch
          %346 = sbr.rel (%p213) target = $region44
        $region43: #{tpu_custom_call.1} parent=27 // pred_region
          %v347 = vld [vmem:[#allocation2] sm:$0x3]
          %v348 = vsel %vm229, %v347, 0.0
          %349 = vadd.xlane.f32.xlu0 %v348
          %v350 = vpop.xlane.xlu0 %349
          %v351 = vrot.slane %v350, 4
          %v352 = vadd.f32 %v350, %v351
          %v353 = vrot.slane %v352, 2
          %v354 = vadd.f32 %v352, %v353
          %v355 = vrot.slane %v354, 1
          %v356 = vadd.f32 %v354, %v355
          %s357 = vtos %v356
          %v358 = vrcp.pop 512.0
          %s359 = vtos %v358
          %s360 = smul.f32 %s357, %s359
          %v361 = vld [vmem:[%s333] sm:$0x3]
          %v362 = vsel %vm229, %v361, 0.0
          %363 = vadd.xlane.f32.xlu0 %v362
          %v364 = vpop.xlane.xlu0 %363
          %v365 = vrot.slane %v364, 4
          %v366 = vadd.f32 %v364, %v365
          %v367 = vrot.slane %v366, 2
          %v368 = vadd.f32 %v366, %v367
          %v369 = vrot.slane %v368, 1
          %v370 = vadd.f32 %v368, %v369
          %s371 = vtos %v370
          %v372 = vld [vmem:[%s337] sm:$0x3]
          %v373 = vsel %vm229, %v372, 0.0
          %374 = vadd.xlane.f32.xlu0 %v373
          %v375 = vpop.xlane.xlu0 %374
          %v376 = vrot.slane %v375, 4
          %v377 = vadd.f32 %v375, %v376
          %v378 = vrot.slane %v377, 2
          %v379 = vadd.f32 %v377, %v378
          %v380 = vrot.slane %v379, 1
          %v381 = vadd.f32 %v379, %v380
          %s382 = vtos %v381
          %s383 = ssub.f32 %s382, %s371
          %v384 = vld [vmem:[%s341] sm:$0x3]
          %v385 = vsel %vm229, %v384, 0.0
          %386 = vadd.xlane.f32.xlu0 %v385
          %v387 = vpop.xlane.xlu0 %386
          %v388 = vrot.slane %v387, 4
          %v389 = vadd.f32 %v387, %v388
          %v390 = vrot.slane %v389, 2
          %v391 = vadd.f32 %v389, %v390
          %v392 = vrot.slane %v391, 1
          %v393 = vadd.f32 %v391, %v392
          %s394 = vtos %v393
          %s395 = ssub.f32 %s394, %s371
          %s396 = smul.f32 %s371, 2.0
          %s397 = sadd.f32 %s396, 1.0
          %s398 = sadd.f32 %s396, %s395
          %s399 = sadd.f32 %s398, %s383
          %s400 = sadd.f32 %s399, 1.0
          %v401 = vstv %s400
          %v402 = vrcp.pop %v401
          %s403 = vtos %v402
          %s404 = smul.f32 %s397, %s403
          %s405 = ssub.f32 1.0, %s404
          %s406 = smul.f32 %s405, 0.1
          %s407 = sadd.f32 %s406, %s360
          %s408 = scalar_lea.smem [#allocation8], 0
          %409 = sst [smem:[%s408]] %s407
        $region44: #{tpu_custom_call.1} parent=27 // pred_fallthru
          _
        // Predicated region
        $region45: #{tpu_custom_call.1} parent=27 // pred_check
          %p410 = pneg %p101
        $region46: #{tpu_custom_call.1} parent=27 // pred_check_branch
          %412 = sbr.rel (%p410) target = $region48
        $region47: #{tpu_custom_call.1} parent=27 // pred_region
          %s414 = ssub.s32 16, 16
          %415 = vsyncadd [#allocation5], %s414
          %418 = dma.smem_to_hbm [#allocation8], 16, %s2, [#allocation5]
        $region48: #{tpu_custom_call.1} parent=27 // pred_fallthru
          _
        // Predicated region
        $region49: #{tpu_custom_call.1} parent=27 // pred_check
          %p419 = pneg %p101
        $region50: #{tpu_custom_call.1} parent=27 // pred_check_branch
          %421 = sbr.rel (%p419) target = $region52
        $region51: #{tpu_custom_call.1} parent=27 // pred_region
          %422 = dma.done [#allocation5], 16
        $region52: #{tpu_custom_call.1} parent=27 // pred_fallthru
          _
        %423 = sfence
      $region28: #{tpu_custom_call.1} parent=5 // pred_fallthru
        _
      %p424 = scmp.le.s32.totalorder 2, %s15
      // Predicated region
      $region53: #{tpu_custom_call.1} parent=5 // pred_check
        %p425 = pneg %p424
      $region54: #{tpu_custom_call.1} parent=5 // pred_check_branch
        %427 = sbr.rel (%p425) target = $region56
      $region55: #{tpu_custom_call.1} parent=5 // pred_region
        %s428 = ssub.s32 %s15, 2
      $region56: #{tpu_custom_call.1} parent=5 // pred_fallthru
        _
    $region6: #{tpu_custom_call.1} parent=1 // loop_footer
      %s19 = sadd.s32 1, %s15
    $region7: #{tpu_custom_call.1} parent=1 // loop_footer_branch
      %14 = sbr.rel target = $region3
    $region8: #{tpu_custom_call.1} parent=1 // loop_exit
      _
    %429 = vsyncpa [#allocation4], 1
    %s430 = scalar_lea.sflag [#allocation4], 1
    %431 = vsyncpa %s430, 1
    %432 = vsyncpa [#allocation7], 1
    %s433 = scalar_lea.sflag [#allocation7], 1
    %434 = vsyncpa %s433, 1
    %435 = vsyncpa [#allocation5], 1
    %s436 = scalar_lea.sflag [#allocation5], 1
    %437 = vsyncpa %s436, 1

</llo_original>
